<compile_context>
chip_gen: v5e
topology: v5e:2x2
jax: 0.10.0
libtpu: 0.0.40
codegen_flags: <defaults>
</compile_context>

<pallas_src>
import jax
import jax.numpy as jnp
from jax import lax
from jax.experimental import pallas as pl
from jax.experimental.pallas import tpu as pltpu


def _round_up(x, m):
    return ((x + m - 1) // m) * m


def _device_hint():
    """(min parallel grid steps, per-step VMEM budget in bytes) for this chip."""
    try:
        kind = jax.devices()[0].device_kind.lower()
    except Exception:
        kind = ""
    is_v7 = "v7" in kind
    # v7x: 2 TensorCores/chip, 64 MiB VMEM/core -> keep >=2 balanced parallel
    # steps and stay well under 64 MiB.  v5e/v6e: single TC, 128 MiB VMEM ->
    # the grid is a serial loop, so prefer one big tile.
    min_steps = 2 if is_v7 else 1
    vmem_cap = (48 if is_v7 else 96) * 1024 * 1024
    return min_steps, vmem_cap


def _tile_plan(n, l, c_total, c_out, kc, c4, pad, target_rows=512):
    """Pick batch_tile (how many batch rows fold into the matmul M dim per
    grid step), the grid length, and a vmem_limit_bytes derived from the
    actual tile footprint."""
    min_steps, vmem_cap = _device_hint()

    def tile_bytes(bt):
        rows = bt * l
        stream = (bt * l * c_total * 2 * 2            # xh bf16 in, double-buffered
                  + rows * c_out * 4 * 2              # c_prev f32 in
                  + rows * c_out * (2 + 4) * 2        # h bf16 + c f32 out
                  + kc * c4 * 2 * 2 + c4 * 4 * 2)     # weight + bias
        scratch = bt * (l + 2 * pad) * c_total * 2    # halo scratch
        live = (rows * kc * 2                         # im2col LHS
                + 2 * rows * c4 * 4                   # acc + gates
                + 6 * rows * max(c_out, 128) * 4)     # gate-math temporaries
        return stream + scratch + live

    def shape_ok(bt):
        # (rows, c_out) blocks need rows % 8 == 0 unless the block spans the
        # whole array (num_steps == 1).
        return (n // bt == 1) or ((bt * l) % 8 == 0)

    divisors = [d for d in range(1, n + 1) if n % d == 0]
    cands = ([d for d in divisors if n // d >= min_steps and shape_ok(d)]
             or [d for d in divisors if shape_ok(d)]
             or [n])
    best = cands[0]
    for d in cands:                       # ascending; tile_bytes is monotone in d
        if tile_bytes(d) > vmem_cap:
            break
        best = d
        if d * l >= target_rows:          # ~full MXU M / near-roofline tile
            break
    num_steps = n // best
    vmem_limit = int(min(max(2 * tile_bytes(best), 32 * 1024 * 1024), vmem_cap))
    return best, num_steps, vmem_limit


def convlstm_cell_kernel(xh_ref, c_prev_ref, w_ref, b_ref,
                         h_next_ref, c_next_ref, halo_ref):
    """One batch-tile of the ConvLSTM cell.

    xh_ref:     (B_T, L, C_total)      bf16  [x ; h_last], channels-last
    c_prev_ref: (B_T*L, C_out)         f32   previous cell state (unpadded)
    w_ref:      (K*C_total, C4)        bf16  im2col conv weight (k-major rows,
                                             dense gate-major columns, C4 =
                                             round_up(4*C_out, 128))
    b_ref:      (1, C4)                f32   conv bias (same column layout)
    h_next_ref: (B_T*L, C_out)         bf16  next hidden state
    c_next_ref: (B_T*L, C_out)         f32   next cell state
    halo_ref:   (B_T, L + 2*pad, C_total) bf16 VMEM scratch (conv halo)
    """
    b_t, l_len, c_total = xh_ref.shape
    n_ch = c_next_ref.shape[-1]
    kc, _ = w_ref.shape
    k_taps = kc // c_total
    pad = k_taps // 2

    # Fill the halo scratch once: zero the two pad bands, write the tile body.
    # Shifts never cross batch boundaries because axis 1 is the per-batch L axis.
    if pad > 0:
        zero_band = jnp.zeros((b_t, pad, c_total), halo_ref.dtype)
        halo_ref[:, :pad, :] = zero_band
        halo_ref[:, pad + l_len:, :] = zero_band
    halo_ref[:, pad:pad + l_len, :] = xh_ref[...]

    # im2col LHS from K static sublane-offset views of the halo scratch:
    # one bf16 MXU matmul over all taps per grid step.
    lhs = jnp.concatenate(
        [halo_ref[:, k:k + l_len, :] for k in range(k_taps)], axis=-1,
    ).reshape(b_t * l_len, kc)

    acc = jnp.dot(lhs, w_ref[...], preferred_element_type=jnp.float32)
    acc = acc + b_ref[...]                       # (rows, C4) f32

    # The module applies sigmoid to ALL four pre-activations (incl. g) —
    # reproduced exactly.  Done lane-dense on the packed gate slab.
    gates = jax.nn.sigmoid(acc)

    i = gates[:, 0 * n_ch:1 * n_ch]
    f = gates[:, 1 * n_ch:2 * n_ch]
    o = gates[:, 2 * n_ch:3 * n_ch]
    g = gates[:, 3 * n_ch:4 * n_ch]

    c_next = f * c_prev_ref[...] + i * g
    c_next_ref[...] = c_next
    h_next_ref[...] = (o * jnp.tanh(c_next)).astype(h_next_ref.dtype)


def convlstm_cell_forward(x_ncl, h_ncl, c_ncl, weight, bias, kernel_size,
                          matmul_dtype=jnp.bfloat16):
    """x_ncl: (N, C_in, L); h_ncl, c_ncl: (N, C_out, L).
    weight: (4*C_out, C_in + C_out, K)  (PyTorch Conv1d OIH); bias: (4*C_out,).
    Returns (h_next, c_next) in NCL (f32), matching the PyTorch module."""
    N, c_in, L = x_ncl.shape
    c_out = h_ncl.shape[1]
    K = int(kernel_size)
    assert K % 2 == 1, "Conv1d 'same'-length output requires odd kernel_size"
    pad = K // 2
    c_total = c_in + c_out
    kc = K * c_total
    c4 = _round_up(4 * c_out, 128)        # dense gate slab, padded to 128 lanes total

    # --- one-time parameter re-layout (tiny arrays; hoist out of any scan) ---
    # OIH (4*C_out, C_total, K) -> rows k-major/channel-minor, dense gate columns.
    w_im2col = jnp.transpose(weight, (2, 1, 0)).reshape(kc, 4 * c_out)
    b_row = bias.reshape(1, 4 * c_out)
    if c4 != 4 * c_out:
        w_im2col = jnp.pad(w_im2col, ((0, 0), (0, c4 - 4 * c_out)))
        b_row = jnp.pad(b_row, ((0, 0), (0, c4 - 4 * c_out)))
    w_im2col = w_im2col.astype(matmul_dtype)
    b_row = b_row.astype(jnp.float32)

    # --- activations: NCL -> channels-last, single dense [x;h] bf16 stream ---
    xh_nlc = jnp.concatenate(
        [jnp.transpose(x_ncl, (0, 2, 1)), jnp.transpose(h_ncl, (0, 2, 1))],
        axis=-1).astype(matmul_dtype)                                  # (N, L, C_total)
    c_flat = jnp.transpose(c_ncl, (0, 2, 1)).reshape(N * L, c_out).astype(jnp.float32)

    batch_tile, num_steps, vmem_limit = _tile_plan(N, L, c_total, c_out, kc, c4, pad)
    rows_per_step = batch_tile * L

    h_flat, c_next_flat = pl.pallas_call(
        convlstm_cell_kernel,
        out_shape=(jax.ShapeDtypeStruct((N * L, c_out), matmul_dtype),   # h: bf16
                   jax.ShapeDtypeStruct((N * L, c_out), jnp.float32)),   # c: f32
        grid_spec=pltpu.PrefetchScalarGridSpec(
            num_scalar_prefetch=0,
            grid=(num_steps,),
            in_specs=[
                pl.BlockSpec((batch_tile, L, c_total), lambda n: (n, 0, 0)),
                pl.BlockSpec((rows_per_step, c_out), lambda n: (n, 0)),
                pl.BlockSpec((kc, c4), lambda n: (0, 0)),
                pl.BlockSpec((1, c4), lambda n: (0, 0)),
            ],
            out_specs=[
                pl.BlockSpec((rows_per_step, c_out), lambda n: (n, 0)),
                pl.BlockSpec((rows_per_step, c_out), lambda n: (n, 0)),
            ],
            scratch_shapes=[
                pltpu.VMEM((batch_tile, L + 2 * pad, c_total), matmul_dtype),
            ],
        ),
        compiler_params=pltpu.CompilerParams(
            dimension_semantics=("parallel",),
            vmem_limit_bytes=vmem_limit,
        ),
    )(xh_nlc, c_flat, w_im2col, b_row)

    # Back to the module's NCL / f32 interface.  In a recurrent scan keep h/c
    # in the kernel's NLC layout across steps and hoist these transposes out.
    h_next = jnp.transpose(h_flat.reshape(N, L, c_out), (0, 2, 1)).astype(jnp.float32)
    c_next = jnp.transpose(c_next_flat.reshape(N, L, c_out), (0, 2, 1))
    return h_next, c_next


def convlstm_cell_reference(x_ncl, h_ncl, c_ncl, weight, bias, kernel_size,
                            conv_dtype=jnp.float32):
    """Pure-JAX reference mirroring the PyTorch forward.
    conv_dtype=bfloat16 gives a precision-matched reference for the bf16 MXU path."""
    pad = kernel_size // 2
    combined = jnp.concatenate([x_ncl, h_ncl], axis=1).astype(conv_dtype)
    conv = lax.conv_general_dilated(
        combined, weight.astype(conv_dtype), window_strides=(1,),
        padding=[(pad, pad)], dimension_numbers=("NCH", "OIH", "NCH"),
        preferred_element_type=jnp.float32,
    ) + bias[None, :, None]
    cc_i, cc_f, cc_o, cc_g = jnp.split(conv, 4, axis=1)
    i = jax.nn.sigmoid(cc_i)
    f = jax.nn.sigmoid(cc_f)
    o = jax.nn.sigmoid(cc_o)
    g = jax.nn.sigmoid(cc_g)  # sigmoid (not tanh) — exactly as in the module
    c_next = f * c_ncl + i * g
    h_next = o * jnp.tanh(c_next)
    return h_next, c_next


if __name__ == "__main__":
    # Module hyperparameters (is_conv1d=True, bias=True).
    in_channels = 4
    out_channels = 32
    kernel_size = 3
    batch = 2
    length = 16

    key = jax.random.PRNGKey(0)
    k_x, k_h, k_c, k_w, k_b = jax.random.split(key, 5)

    x = jax.random.normal(k_x, (batch, in_channels, length), jnp.float32)
    h_last = jax.random.normal(k_h, (batch, out_channels, length), jnp.float32)
    c_last = jax.random.normal(k_c, (batch, out_channels, length), jnp.float32)

    # Deterministic parameter init (Conv1d weight/bias shapes from __init__).
    fan_in = (in_channels + out_channels) * kernel_size
    bound = 1.0 / (fan_in ** 0.5)
    weight = jax.random.uniform(
        k_w, (4 * out_channels, in_channels + out_channels, kernel_size),
        jnp.float32, -bound, bound)
    bias = jax.random.uniform(k_b, (4 * out_channels,), jnp.float32, -bound, bound)

    fwd = jax.jit(convlstm_cell_forward, static_argnames=("kernel_size",))
    h_next, c_next = fwd(x, h_last, c_last, weight, bias, kernel_size=kernel_size)
    jax.block_until_ready((h_next, c_next))

    assert h_next.shape == (batch, out_channels, length)
    assert c_next.shape == (batch, out_channels, length)

    # Precision-matched reference (bf16 matmul operands, f32 accumulation): tight.
    h_bf, c_bf = convlstm_cell_reference(
        x, h_last, c_last, weight, bias, kernel_size, conv_dtype=jnp.bfloat16)
    assert jnp.allclose(h_next, h_bf, atol=1e-2, rtol=1e-2)
    assert jnp.allclose(c_next, c_bf, atol=1e-2, rtol=1e-2)

    # Full-f32 reference mirroring the PyTorch module: loose sanity bound on the
    # standard bf16-matmul precision tradeoff.
    h_f32, c_f32 = convlstm_cell_reference(x, h_last, c_last, weight, bias, kernel_size)
    assert jnp.allclose(h_next, h_f32, atol=5e-2, rtol=5e-2)
    assert jnp.allclose(c_next, c_f32, atol=5e-2, rtol=5e-2)

    print("KERNEL_OK")
</pallas_src>

<mosaic_0001>
module attributes {stable_mosaic.version = 11 : i64} {
  func.func @convlstm_cell_kernel(%arg0: i32, %arg1: memref<2x16x36xbf16, #tpu.memory_space<vmem>>, %arg2: memref<32x32xf32, #tpu.memory_space<vmem>>, %arg3: memref<108x128xbf16, #tpu.memory_space<vmem>>, %arg4: memref<1x128xf32, #tpu.memory_space<vmem>>, %arg5: memref<32x32xbf16, #tpu.memory_space<vmem>>, %arg6: memref<32x32xf32, #tpu.memory_space<vmem>>, %arg7: memref<2x18x36xbf16, #tpu.memory_space<vmem>>) attributes {dimension_semantics = [#tpu.dimension_semantics<parallel>], iteration_bounds = array<i64: 1>, scalar_prefetch = 0 : i64, scratch_operands = 1 : i64, tpu.core_type = #tpu.core_type<tc>, window_params = [{transform_indices = @transform_0, window_bounds = array<i64: 2, 16, 36>}, {transform_indices = @transform_1, window_bounds = array<i64: 32, 32>}, {pipeline_mode = #tpu.pipeline_mode<synchronous>, transform_indices = @transform_2, window_bounds = array<i64: 108, 128>}, {pipeline_mode = #tpu.pipeline_mode<synchronous>, transform_indices = @transform_3, window_bounds = array<i64: 1, 128>}, {transform_indices = @transform_4, window_bounds = array<i64: 32, 32>}, {transform_indices = @transform_5, window_bounds = array<i64: 32, 32>}]} {
    %cst = arith.constant 0.000000e+00 : bf16
    %0 = vector.broadcast %cst : bf16 to vector<2x1x36xbf16>
    %c0 = arith.constant 0 : index
    %c0_0 = arith.constant 0 : index
    %c0_1 = arith.constant 0 : index
    %1 = vector.load %arg7[%c0, %c0_0, %c0_1] : memref<2x18x36xbf16, #tpu.memory_space<vmem>>, vector<2x1x36xbf16>
    tpu.vector_store %arg7[%c0, %c0_0, %c0_1], %0 {strides = array<i32>} : memref<2x18x36xbf16, #tpu.memory_space<vmem>>, vector<2x1x36xbf16>,
    %c0_2 = arith.constant 0 : index
    %c17 = arith.constant 17 : index
    %c0_3 = arith.constant 0 : index
    %2 = vector.load %arg7[%c0_2, %c17, %c0_3] : memref<2x18x36xbf16, #tpu.memory_space<vmem>>, vector<2x1x36xbf16>
    tpu.vector_store %arg7[%c0_2, %c17, %c0_3], %0 {strides = array<i32>} : memref<2x18x36xbf16, #tpu.memory_space<vmem>>, vector<2x1x36xbf16>,
    %c0_4 = arith.constant 0 : index
    %c0_5 = arith.constant 0 : index
    %c0_6 = arith.constant 0 : index
    %3 = vector.load %arg1[%c0_4, %c0_5, %c0_6] : memref<2x16x36xbf16, #tpu.memory_space<vmem>>, vector<2x16x36xbf16>
    %c0_7 = arith.constant 0 : index
    %c1 = arith.constant 1 : index
    %c0_8 = arith.constant 0 : index
    %4 = vector.load %arg7[%c0_7, %c1, %c0_8] : memref<2x18x36xbf16, #tpu.memory_space<vmem>>, vector<2x16x36xbf16>
    tpu.vector_store %arg7[%c0_7, %c1, %c0_8], %3 {strides = array<i32>} : memref<2x18x36xbf16, #tpu.memory_space<vmem>>, vector<2x16x36xbf16>,
    %c0_9 = arith.constant 0 : index
    %c0_10 = arith.constant 0 : index
    %c0_11 = arith.constant 0 : index
    %5 = vector.load %arg7[%c0_9, %c0_10, %c0_11] : memref<2x18x36xbf16, #tpu.memory_space<vmem>>, vector<2x16x36xbf16>
    %c0_12 = arith.constant 0 : index
    %c1_13 = arith.constant 1 : index
    %c0_14 = arith.constant 0 : index
    %6 = vector.load %arg7[%c0_12, %c1_13, %c0_14] : memref<2x18x36xbf16, #tpu.memory_space<vmem>>, vector<2x16x36xbf16>
    %c0_15 = arith.constant 0 : index
    %c2 = arith.constant 2 : index
    %c0_16 = arith.constant 0 : index
    %7 = vector.load %arg7[%c0_15, %c2, %c0_16] : memref<2x18x36xbf16, #tpu.memory_space<vmem>>, vector<2x16x36xbf16>
    %8 = tpu.concatenate %5, %6, %7 in 2 : vector<2x16x36xbf16>, vector<2x16x36xbf16>, vector<2x16x36xbf16> -> vector<2x16x108xbf16>
    %9 = vector.shape_cast %8 : vector<2x16x108xbf16> to vector<32x108xbf16>
    %c0_17 = arith.constant 0 : index
    %c0_18 = arith.constant 0 : index
    %10 = vector.load %arg3[%c0_17, %c0_18] : memref<108x128xbf16, #tpu.memory_space<vmem>>, vector<108x128xbf16>
    %cst_19 = arith.constant dense<0.000000e+00> : vector<32x128xf32>
    %11 = tpu.matmul %9, %10, %cst_19 {dimension_numbers = #tpu.dot_dimension_numbers<[1], [0], [0], [1], [0, 0, 1, 1], [], []>} : vector<32x108xbf16>, vector<108x128xbf16>, vector<32x128xf32> -> vector<32x128xf32>
    %c0_20 = arith.constant 0 : index
    %c0_21 = arith.constant 0 : index
    %12 = vector.load %arg4[%c0_20, %c0_21] : memref<1x128xf32, #tpu.memory_space<vmem>>, vector<1x128xf32>
    %13 = vector.broadcast %12 : vector<1x128xf32> to vector<32x128xf32>
    %14 = arith.addf %11, %13 : vector<32x128xf32>
    %15 = arith.negf %14 : vector<32x128xf32>
    %16 = math.exp %15 : vector<32x128xf32>
    %cst_22 = arith.constant 1.000000e+00 : f32
    %17 = vector.broadcast %cst_22 : f32 to vector<32x128xf32>
    %18 = arith.addf %17, %16 : vector<32x128xf32>
    %19 = arith.divf %17, %18 : vector<32x128xf32>
    %20 = vector.extract_strided_slice %19 {offsets = [0, 0], sizes = [32, 32], strides = [1, 1]} : vector<32x128xf32> to vector<32x32xf32>
    %21 = vector.extract_strided_slice %19 {offsets = [0, 32], sizes = [32, 32], strides = [1, 1]} : vector<32x128xf32> to vector<32x32xf32>
    %22 = vector.extract_strided_slice %19 {offsets = [0, 64], sizes = [32, 32], strides = [1, 1]} : vector<32x128xf32> to vector<32x32xf32>
    %23 = vector.extract_strided_slice %19 {offsets = [0, 96], sizes = [32, 32], strides = [1, 1]} : vector<32x128xf32> to vector<32x32xf32>
    %c0_23 = arith.constant 0 : index
    %c0_24 = arith.constant 0 : index
    %24 = vector.load %arg2[%c0_23, %c0_24] : memref<32x32xf32, #tpu.memory_space<vmem>>, vector<32x32xf32>
    %25 = arith.mulf %21, %24 : vector<32x32xf32>
    %26 = arith.mulf %20, %23 : vector<32x32xf32>
    %27 = arith.addf %25, %26 : vector<32x32xf32>
    %c0_25 = arith.constant 0 : index
    %c0_26 = arith.constant 0 : index
    %28 = vector.load %arg6[%c0_25, %c0_26] : memref<32x32xf32, #tpu.memory_space<vmem>>, vector<32x32xf32>
    tpu.vector_store %arg6[%c0_25, %c0_26], %27 {strides = array<i32>} : memref<32x32xf32, #tpu.memory_space<vmem>>, vector<32x32xf32>,
    %29 = math.tanh %27 : vector<32x32xf32>
    %30 = arith.mulf %22, %29 : vector<32x32xf32>
    %31 = arith.truncf %30 : vector<32x32xf32> to vector<32x32xbf16>
    %c0_27 = arith.constant 0 : index
    %c0_28 = arith.constant 0 : index
    %32 = vector.load %arg5[%c0_27, %c0_28] : memref<32x32xbf16, #tpu.memory_space<vmem>>, vector<32x32xbf16>
    tpu.vector_store %arg5[%c0_27, %c0_28], %31 {strides = array<i32>} : memref<32x32xbf16, #tpu.memory_space<vmem>>, vector<32x32xbf16>,
    return
  }
  func.func @transform_0(%arg0: i32) -> (i32, i32, i32) {
    %c0_i32 = arith.constant 0 : i32
    %c0_i32_0 = arith.constant 0 : i32
    %c0_i32_1 = arith.constant 0 : i32
    return %arg0, %c0_i32, %c0_i32_0 : i32, i32, i32
  }
  func.func @transform_1(%arg0: i32) -> (i32, i32) {
    %c0_i32 = arith.constant 0 : i32
    %c0_i32_0 = arith.constant 0 : i32
    return %arg0, %c0_i32 : i32, i32
  }
  func.func @transform_2(%arg0: i32) -> (i32, i32) {
    %c0_i32 = arith.constant 0 : i32
    %c0_i32_0 = arith.constant 0 : i32
    %c0_i32_1 = arith.constant 0 : i32
    return %c0_i32, %c0_i32_0 : i32, i32
  }
  func.func @transform_3(%arg0: i32) -> (i32, i32) {
    %c0_i32 = arith.constant 0 : i32
    %c0_i32_0 = arith.constant 0 : i32
    %c0_i32_1 = arith.constant 0 : i32
    return %c0_i32, %c0_i32_0 : i32, i32
  }
  func.func @transform_4(%arg0: i32) -> (i32, i32) {
    %c0_i32 = arith.constant 0 : i32
    %c0_i32_0 = arith.constant 0 : i32
    return %arg0, %c0_i32 : i32, i32
  }
  func.func @transform_5(%arg0: i32) -> (i32, i32) {
    %c0_i32 = arith.constant 0 : i32
    %c0_i32_0 = arith.constant 0 : i32
    return %arg0, %c0_i32 : i32, i32
  }
}

</mosaic_0001>

<llo_original>
// kernel: convlstm_cell_forward.1
$region0: #{convlstm_cell_forward.1}
  #allocation0 [shape = 'u32[]', space=smem, size = 0x4, offset = 0x4, fixed_abs, tag = 'smem constant byte address 0x4 - core index']
  #allocation1 [shape = 'u32[72,128]{1,0:T(1,128)}', space=vmem, size = 0x9000, scoped, tag = 'internal scratch']
  #allocation2 [shape = 'bf16[2,18,36]{2,1,0:T(8,128)(2,1)}', space=vmem, size = 0x3000, scoped, tag = 'scratch operand']
  %s0 = inlined_call_operand.vmem [shape: bf16[2,16,36], index: 0, kind: input, shape index: {}]
  %s1 = inlined_call_operand.vmem [shape: f32[32,32], index: 1, kind: input, shape index: {}]
  %s2 = inlined_call_operand.vmem [shape: bf16[108,128], index: 2, kind: input, shape index: {}]
  %s3 = inlined_call_operand.vmem [shape: f32[1,128], index: 3, kind: input, shape index: {}]
  %s4 = inlined_call_operand.vmem [shape: bf16[32,32], index: 4, kind: output, shape index: {0}]
  %s5 = inlined_call_operand.hbm [shape: f32[32,32], index: 5, kind: output, shape index: {1}]
  %6 = xla_tuple %s4, %s5
  %s7 = sld [smem:[#allocation0]]
  $region34: #{convlstm_cell_forward.1} parent=0
    _
  %s9 = ssub.s32 1, %s7
  %s10 = scalar_select 0, %s9, %s7
  $region1: #{convlstm_cell_forward.1} parent=0
    #allocation3 [shape = 'u8[16384]{0}', space=vmem, size = 0x4000, scoped, tag = 'output window, operand 1, single buffered']
    #allocation4 [shape = 's32[1]{0}', space=sflag, size = 0x4, scoped, tag = 'scoped memory for convlstm_cell_forward.1']
    %11 = vsyncpa [#allocation4], 0
    // Predicated region
    $region2: #{convlstm_cell_forward.1} parent=1 // pred_check
      _
    $region3: #{convlstm_cell_forward.1} parent=1 // pred_check_branch
      %13 = sbr.rel (0) target = $region5
    $region4: #{convlstm_cell_forward.1} parent=1 // pred_region
      _
    $region5: #{convlstm_cell_forward.1} parent=1 // pred_fallthru
      _
    // Predicated region
    $region6: #{convlstm_cell_forward.1} parent=1 // pred_check
      _
    $region7: #{convlstm_cell_forward.1} parent=1 // pred_check_branch
      %15 = sbr.rel (0) target = $region9
    $region8: #{convlstm_cell_forward.1} parent=1 // pred_region
      _
    $region9: #{convlstm_cell_forward.1} parent=1 // pred_fallthru
      _
    // Predicated region
    $region10: #{convlstm_cell_forward.1} parent=1 // pred_check
      _
    $region11: #{convlstm_cell_forward.1} parent=1 // pred_check_branch
      %17 = sbr.rel (0) target = $region13
    $region12: #{convlstm_cell_forward.1} parent=1 // pred_region
      _
    $region13: #{convlstm_cell_forward.1} parent=1 // pred_fallthru
      _
    // Predicated region
    $region14: #{convlstm_cell_forward.1} parent=1 // pred_check
      _
    $region15: #{convlstm_cell_forward.1} parent=1 // pred_check_branch
      %19 = sbr.rel (0) target = $region17
    $region16: #{convlstm_cell_forward.1} parent=1 // pred_region
      _
    $region17: #{convlstm_cell_forward.1} parent=1 // pred_fallthru
      _
    %vm21 = vcmask 286720
    %vm22 = vsmask.f32 256
    %vm23 = vmand %vm21, %vm22
    %v24 = vld [vmem:[#allocation2] sm:$0x1]
    %v25 = vsel %vm23, 0, %v24
    %26 = vst [vmem:[#allocation2] sm:$0x1] %v25
    %v27 = vld [vmem:[#allocation2 + $0xc] sm:$0x1]
    %v28 = vsel %vm23, 0, %v27
    %29 = vst [vmem:[#allocation2 + $0xc] sm:$0x1] %v28
    %vm30 = vsmask.f32 7938
    %vm31 = vmand %vm21, %vm30
    %v32 = vld [vmem:[#allocation2 + $0x8] sm:$0x1]
    %v33 = vsel %vm31, 0, %v32
    %34 = vst [vmem:[#allocation2 + $0x8] sm:$0x1] %v33
    %v35 = vld [vmem:[#allocation2 + $0x14] sm:$0x1]
    %v36 = vsel %vm31, 0, %v35
    %37 = vst [vmem:[#allocation2 + $0x14] sm:$0x1] %v36
    %v38 = vld [vmem:[%s0] sm:$0xf]
    %v39 = vld [vmem:[%s0 + $0x4] sm:$0xf]
    %v40 = vld [vmem:[%s0 + $0x8] sm:$0xf]
    %v41 = vld [vmem:[%s0 + $0xc] sm:$0xf]
    %vm42 = vsmask.f32 4368
    %vm43 = vmor %vm22, %vm42
    %v45 = vshrl.u32 %v38, 16
    %v47 = vrot.slane %v45, 7
    %v48 = vshll.u32 %v38, 16
    %v50 = vor.u32 %v47, %v48
    %v51 = vrot.slane %v47, 4
    %v53 = vshrl.u32 %v39, 16
    %v55 = vrot.slane %v53, 7
    %v56 = vshll.u32 %v39, 16
    %v58 = vor.u32 %v55, %v56
    %v59 = vsel %vm43, %v51, %v58
    %v60 = vrot.slane %v55, 4
    %v62 = vshrl.u32 %v40, 16
    %v64 = vrot.slane %v62, 7
    %v65 = vshll.u32 %v40, 16
    %v67 = vor.u32 %v64, %v65
    %v68 = vrot.slane %v64, 4
    %v70 = vshrl.u32 %v41, 16
    %v72 = vrot.slane %v70, 7
    %v73 = vshll.u32 %v41, 16
    %v75 = vor.u32 %v72, %v73
    %v76 = vsel %vm43, %v68, %v75
    %v77 = vrot.slane %v72, 4
    %vm84 = vcmask 289792
    %vm85 = vmand %vm84, %vm30
    %v86 = vld [vmem:[#allocation2] sm:$0xf]
    %v87 = vsel %vm85, %v50, %v86
    %88 = vst [vmem:[#allocation2] sm:$0xf] %v87
    %vm89 = vcmask 289792
    %90 = vst.msk [vmem:[#allocation2 + $0x4] sm:$0xf] %vm89, %v59
    %v91 = vld [vmem:[#allocation2 + $0x8] sm:$0x1]
    %v92 = vsel %vm23, %v60, %v91
    %93 = vst [vmem:[#allocation2 + $0x8] sm:$0x1] %v92
    %v94 = vld [vmem:[#allocation2 + $0xc] sm:$0xf]
    %v95 = vsel %vm85, %v67, %v94
    %96 = vst [vmem:[#allocation2 + $0xc] sm:$0xf] %v95
    %97 = vst.msk [vmem:[#allocation2 + $0x10] sm:$0xf] %vm89, %v76
    %v98 = vld [vmem:[#allocation2 + $0x14] sm:$0x1]
    %v99 = vsel %vm23, %v77, %v98
    %100 = vst [vmem:[#allocation2 + $0x14] sm:$0x1] %v99
    %v101 = vld [vmem:[#allocation2] sm:$0xf]
    %v102 = vld [vmem:[#allocation2 + $0x4] sm:$0xf]
    %v103 = vld [vmem:[#allocation2 + $0xc] sm:$0xf]
    %v104 = vld [vmem:[#allocation2 + $0x10] sm:$0xf]
    %v105 = vld [vmem:[#allocation2 + $0x8] sm:$0x1]
    %v106 = vld [vmem:[#allocation2 + $0x14] sm:$0x1]
    %v107 = vld [vmem:[#allocation2] sm:$0xe]
    %v108 = vld [vmem:[#allocation2 + $0xc] sm:$0xe]
    %v113 = vunpack.c.l.b16 %v101
    %v114 = vunpack.c.l.b16 %v102
    %v115 = vunpack.c.l.b16 %v103
    %v116 = vunpack.c.l.b16 %v104
    %v117 = vpack.c.b16 %v114, %v113
    %v118 = vpack.c.b16 %v116, %v115
    %v121 = vunpack.c.l.b16 %v105
    %v122 = vunpack.c.l.b16 %v106
    %v123 = vpack.c.b16 %v121, %v121
    %v124 = vpack.c.b16 %v122, %v122
    %vm125 = vsmask.f32 7424
    %v127 = vshrl.u32 %v117, 16
    %v129 = vshll.u32 %v117, 16
    %v131 = vrot.slane %v129, 1
    %v132 = vor.u32 %v127, %v131
    %v134 = vshll.u32 %v123, 16
    %v136 = vrot.slane %v134, 1
    %v137 = vsel %vm125, %v132, %v136
    %v139 = vshrl.u32 %v118, 16
    %v141 = vshll.u32 %v118, 16
    %v143 = vrot.slane %v141, 1
    %v144 = vor.u32 %v139, %v143
    %v146 = vshll.u32 %v124, 16
    %v148 = vrot.slane %v146, 1
    %v149 = vsel %vm125, %v144, %v148
    %150 = vrot.lane.b32.xlu0 %v137, 36
    %v151 = vpop.permute.xlu0 %150
    %152 = vrot.lane.b32.xlu0 %v149, 36
    %v153 = vpop.permute.xlu0 %152
    %v156 = vunpack.c.l.b16 %v107
    %v157 = vunpack.c.l.b16 %v108
    %v158 = vpack.c.b16 %v114, %v156
    %v159 = vpack.c.b16 %v116, %v157
    %vm160 = vcmask 1046528
    %v161 = vrot.slane %v158, 1
    %v162 = vrot.slane %v123, 1
    %v163 = vsel %vm160, %v161, %v162
    %v164 = vrot.slane %v159, 1
    %v165 = vrot.slane %v124, 1
    %v166 = vsel %vm160, %v164, %v165
    %167 = vrot.lane.b32.xlu0 %v163, 72
    %v168 = vpop.permute.xlu0 %167
    %169 = vrot.lane.b32.xlu0 %v166, 72
    %v170 = vpop.permute.xlu0 %169
    %vm171 = vcmask 293888
    %v173 = vsel %vm171, %v117, %v151
    %v175 = vsel %vm171, %v118, %v153
    %vm176 = vcmask 588800
    %v178 = vsel %vm176, %v173, %v168
    %v180 = vsel %vm176, %v175, %v170
    %v181 = vld [vmem:[%s2] sm:$0xf]
    %v182 = vld [vmem:[%s2 + $0x4] sm:$0xf]
    %v183 = vld [vmem:[%s2 + $0x8] sm:$0xf]
    %v184 = vld [vmem:[%s2 + $0xc] sm:$0xf]
    %v185 = vld [vmem:[%s2 + $0x10] sm:$0xf]
    %v186 = vld [vmem:[%s2 + $0x14] sm:$0xf]
    %v187 = vld [vmem:[%s2 + $0x18] sm:$0xf]
    %v188 = vld [vmem:[%s2 + $0x1c] sm:$0xf]
    %v189 = vld [vmem:[%s2 + $0x20] sm:$0xf]
    %v190 = vld [vmem:[%s2 + $0x24] sm:$0xf]
    %v191 = vld [vmem:[%s2 + $0x28] sm:$0xf]
    %v192 = vld [vmem:[%s2 + $0x2c] sm:$0xf]
    %v193 = vld [vmem:[%s2 + $0x30] sm:$0xf]
    %v194 = vld [vmem:[%s2 + $0x34] sm:$0x3]
    %v195 = vld [vmem:[%s3] sm:$0x1]
    %v197 = vperm.slane %v195, 0
    %v213 = vunpack.c.l.b16 %v181
    %v214 = vunpack.c.l.b16 %v182
    %v215 = vunpack.c.l.b16 %v183
    %v216 = vunpack.c.l.b16 %v184
    %v217 = vunpack.c.l.b16 %v185
    %v218 = vunpack.c.l.b16 %v186
    %v219 = vunpack.c.l.b16 %v187
    %v220 = vunpack.c.l.b16 %v188
    %v221 = vunpack.c.l.b16 %v189
    %v222 = vunpack.c.l.b16 %v190
    %v223 = vunpack.c.l.b16 %v191
    %v224 = vunpack.c.l.b16 %v192
    %v225 = vunpack.c.l.b16 %v193
    %v226 = vunpack.c.l.b16 %v194
    %v227 = vpack.c.b16 %v214, %v213
    %v228 = vpack.c.b16 %v216, %v215
    %v229 = vpack.c.b16 %v218, %v217
    %v230 = vpack.c.b16 %v220, %v219
    %v231 = vpack.c.b16 %v222, %v221
    %v232 = vpack.c.b16 %v224, %v223
    %v233 = vpack.c.b16 %v226, %v225
    %vm240 = vcmask 883712
    %v241 = vsel %vm240, %v178, 0
    %v243 = vsel %vm240, %v180, 0
    %vm245 = vcmask 1045504
    %v247 = vsel %vm245, %v233, 0
    %249 = vmatpush.bf16.msra.mxu0 0
    %250 = vmatpush.bf16.msra.mxu0 %v247
    %251 = vmatpush.bf16.msra.mxu0 %v232
    %252 = vmatpush.bf16.msra.mxu0 %v231
    %253 = vmatpush.bf16.msra.mxu0 %v230
    %254 = vmatpush.bf16.msra.mxu0 %v229
    %255 = vmatpush.bf16.msra.mxu0 %v228
    %256 = vmatpush.bf16.msra.mxu0 %v227
    %257 = vmatmul.bf16.gmra.mxu0 %v241
    %v258 = vpop.f32.mrf.mxu0
    %v259 = vadd.f32 %v197, %v258
    %v260 = vpop.f32.mrf.mxu0
    %v261 = vadd.f32 %v197, %v260
    %262 = vmatmul.bf16.gmra.mxu0 %v243
    %v263 = vpop.f32.mrf.mxu0
    %v264 = vadd.f32 %v197, %v263
    %v265 = vpop.f32.mrf.mxu0
    %v266 = vadd.f32 %v197, %v265
    %267 = vdwg.mxu0
    %v268 = vxor.u32 %v259, 2147483648
    %v269 = vxor.u32 %v261, 2147483648
    %v270 = vxor.u32 %v264, 2147483648
    %v271 = vxor.u32 %v266, 2147483648
    %v272 = vmul.f32 %v268, 1.442695
    %v273 = vpow.pop %v272
    %v274 = vmul.f32 %v269, 1.442695
    %v275 = vpow.pop %v274
    %v276 = vmul.f32 %v270, 1.442695
    %v277 = vpow.pop %v276
    %v278 = vmul.f32 %v271, 1.442695
    %v279 = vpow.pop %v278
    %v280 = vadd.f32 %v273, 1.0
    %v281 = vadd.f32 %v275, 1.0
    %v282 = vadd.f32 %v277, 1.0
    %v283 = vadd.f32 %v279, 1.0
    %v284 = vrcp.pop %v280
    %v285 = vmul.f32 %v280, %v284
    %v286 = vsub.f32 1.0, %v285
    %v287 = vmul.f32 %v284, %v286
    %v288 = vadd.f32 %v284, %v287
    %vm289 = vweird.f32 %v280
    %vm290 = vweird.f32 %v284
    %vm291 = vmor %vm289, %vm290
    %v292 = vsel %vm291, %v284, %v288
    %v293 = vand.u32 2147483647, %v280
    %vm294 = vcmp.eq.f32.partialorder %v293, 8.507059e+37
    %v295 = vand.u32 %v280, 2147483648
    %v296 = vor.u32 1.1754944e-38, %v295
    %v297 = vsel %vm294, %v296, %v292
    %v298 = vmul.f32 1.0, %v297
    %v299 = vrcp.pop %v281
    %v300 = vmul.f32 %v281, %v299
    %v301 = vsub.f32 1.0, %v300
    %v302 = vmul.f32 %v299, %v301
    %v303 = vadd.f32 %v299, %v302
    %vm304 = vweird.f32 %v281
    %vm305 = vweird.f32 %v299
    %vm306 = vmor %vm304, %vm305
    %v307 = vsel %vm306, %v299, %v303
    %v308 = vand.u32 2147483647, %v281
    %vm309 = vcmp.eq.f32.partialorder %v308, 8.507059e+37
    %v310 = vand.u32 %v281, 2147483648
    %v311 = vor.u32 1.1754944e-38, %v310
    %v312 = vsel %vm309, %v311, %v307
    %v313 = vmul.f32 1.0, %v312
    %v314 = vrcp.pop %v282
    %v315 = vmul.f32 %v282, %v314
    %v316 = vsub.f32 1.0, %v315
    %v317 = vmul.f32 %v314, %v316
    %v318 = vadd.f32 %v314, %v317
    %vm319 = vweird.f32 %v282
    %vm320 = vweird.f32 %v314
    %vm321 = vmor %vm319, %vm320
    %v322 = vsel %vm321, %v314, %v318
    %v323 = vand.u32 2147483647, %v282
    %vm324 = vcmp.eq.f32.partialorder %v323, 8.507059e+37
    %v325 = vand.u32 %v282, 2147483648
    %v326 = vor.u32 1.1754944e-38, %v325
    %v327 = vsel %vm324, %v326, %v322
    %v328 = vmul.f32 1.0, %v327
    %v329 = vrcp.pop %v283
    %v330 = vmul.f32 %v283, %v329
    %v331 = vsub.f32 1.0, %v330
    %v332 = vmul.f32 %v329, %v331
    %v333 = vadd.f32 %v329, %v332
    %vm334 = vweird.f32 %v283
    %vm335 = vweird.f32 %v329
    %vm336 = vmor %vm334, %vm335
    %v337 = vsel %vm336, %v329, %v333
    %v338 = vand.u32 2147483647, %v283
    %vm339 = vcmp.eq.f32.partialorder %v338, 8.507059e+37
    %v340 = vand.u32 %v283, 2147483648
    %v341 = vor.u32 1.1754944e-38, %v340
    %v342 = vsel %vm339, %v341, %v337
    %v343 = vmul.f32 1.0, %v342
    %v344 = vld [vmem:[%s1] sm:$0xff]
    %v345 = vld [vmem:[%s1 + $0x8] sm:$0xff]
    %v346 = vld [vmem:[%s1 + $0x10] sm:$0xff]
    %v347 = vld [vmem:[%s1 + $0x18] sm:$0xff]
    %352 = vrot.lane.b32.xlu0 %v344, 32
    %v353 = vpop.permute.xlu0 %352
    %354 = vrot.lane.b32.xlu0 %v345, 32
    %v355 = vpop.permute.xlu0 %354
    %356 = vrot.lane.b32.xlu0 %v346, 32
    %v357 = vpop.permute.xlu0 %356
    %358 = vrot.lane.b32.xlu0 %v347, 32
    %v359 = vpop.permute.xlu0 %358
    %v364 = vmul.f32 %v298, %v353
    %v365 = vmul.f32 %v313, %v355
    %v366 = vmul.f32 %v328, %v357
    %v367 = vmul.f32 %v343, %v359
    %372 = vrot.lane.b32.xlu0 %v298, 32
    %v373 = vpop.permute.xlu0 %372
    %374 = vrot.lane.b32.xlu0 %v313, 32
    %v375 = vpop.permute.xlu0 %374
    %376 = vrot.lane.b32.xlu0 %v328, 32
    %v377 = vpop.permute.xlu0 %376
    %378 = vrot.lane.b32.xlu0 %v343, 32
    %v379 = vpop.permute.xlu0 %378
    %v384 = vmul.f32 %v298, %v373
    %v385 = vmul.f32 %v313, %v375
    %v386 = vmul.f32 %v328, %v377
    %v387 = vmul.f32 %v343, %v379
    %392 = vrot.lane.b32.xlu0 %v384, 32
    %v393 = vpop.permute.xlu0 %392
    %394 = vrot.lane.b32.xlu0 %v385, 32
    %v395 = vpop.permute.xlu0 %394
    %396 = vrot.lane.b32.xlu0 %v386, 32
    %v397 = vpop.permute.xlu0 %396
    %398 = vrot.lane.b32.xlu0 %v387, 32
    %v399 = vpop.permute.xlu0 %398
    %v404 = vadd.f32 %v364, %v393
    %v405 = vadd.f32 %v365, %v395
    %v406 = vadd.f32 %v366, %v397
    %v407 = vadd.f32 %v367, %v399
    %412 = vrot.lane.b32.xlu0 %v404, 96
    %v413 = vpop.permute.xlu0 %412
    %414 = vrot.lane.b32.xlu0 %v405, 96
    %v415 = vpop.permute.xlu0 %414
    %416 = vrot.lane.b32.xlu0 %v406, 96
    %v417 = vpop.permute.xlu0 %416
    %418 = vrot.lane.b32.xlu0 %v407, 96
    %v419 = vpop.permute.xlu0 %418
    %vm424 = vcmask 261120
    %425 = vst.msk [vmem:[#allocation3] sm:$0xff] %vm424, %v413
    %426 = vst.msk [vmem:[#allocation3 + $0x8] sm:$0xff] %vm424, %v415
    %427 = vst.msk [vmem:[#allocation3 + $0x10] sm:$0xff] %vm424, %v417
    %428 = vst.msk [vmem:[#allocation3 + $0x18] sm:$0xff] %vm424, %v419
    %v429 = vtanh.pop %v404
    %v430 = vtanh.pop %v405
    %v431 = vtanh.pop %v406
    %v432 = vtanh.pop %v407
    %437 = vrot.lane.b32.xlu0 %v429, 32
    %v438 = vpop.permute.xlu0 %437
    %439 = vrot.lane.b32.xlu0 %v430, 32
    %v440 = vpop.permute.xlu0 %439
    %441 = vrot.lane.b32.xlu0 %v431, 32
    %v442 = vpop.permute.xlu0 %441
    %443 = vrot.lane.b32.xlu0 %v432, 32
    %v444 = vpop.permute.xlu0 %443
    %v449 = vmul.f32 %v298, %v438
    %v450 = vmul.f32 %v313, %v440
    %v451 = vmul.f32 %v328, %v442
    %v452 = vmul.f32 %v343, %v444
    %v453 = vpack.c.bf16 %v449, %v449
    %v454 = vpack.c.bf16 %v450, %v450
    %v455 = vpack.c.bf16 %v451, %v451
    %v456 = vpack.c.bf16 %v452, %v452
    %461 = vrot.lane.b32.xlu0 %v453, 64
    %v462 = vpop.permute.xlu0 %461
    %463 = vrot.lane.b32.xlu0 %v454, 64
    %v464 = vpop.permute.xlu0 %463
    %465 = vrot.lane.b32.xlu0 %v455, 64
    %v466 = vpop.permute.xlu0 %465
    %467 = vrot.lane.b32.xlu0 %v456, 64
    %v468 = vpop.permute.xlu0 %467
    %vm473 = vcmask 257024
    %474 = vst.msk [vmem:[%s4] sm:$0xf] %vm473, %v462
    %475 = vst.msk [vmem:[%s4 + $0x4] sm:$0xf] %vm473, %v464
    %476 = vst.msk [vmem:[%s4 + $0x8] sm:$0xf] %vm473, %v466
    %477 = vst.msk [vmem:[%s4 + $0xc] sm:$0xf] %vm473, %v468
    // Predicated region
    $region18: #{convlstm_cell_forward.1} parent=1 // pred_check
      _
    $region19: #{convlstm_cell_forward.1} parent=1 // pred_check_branch
      %479 = sbr.rel (0) target = $region21
    $region20: #{convlstm_cell_forward.1} parent=1 // pred_region
      _
    $region21: #{convlstm_cell_forward.1} parent=1 // pred_fallthru
      _
    // Predicated region
    $region22: #{convlstm_cell_forward.1} parent=1 // pred_check
      _
    $region23: #{convlstm_cell_forward.1} parent=1 // pred_check_branch
      %481 = sbr.rel (0) target = $region25
    $region24: #{convlstm_cell_forward.1} parent=1 // pred_region
      %483 = vsyncadd [#allocation4], 0
      %s484 = sshll.u32 [#allocation3], 4
      %s485 = int_to_ptr.vmem [resolvable:$true] %s484
      %s486 = sshll.u32 %s5, 4
      %s487 = int_to_ptr.hbm [resolvable:$true] %s486
      %492 = dma.vmem_to_hbm [thread:$0]  %s485, 512, %s487, [#allocation4], 128, 128, 8
    $region25: #{convlstm_cell_forward.1} parent=1 // pred_fallthru
      _
    // Predicated region
    $region26: #{convlstm_cell_forward.1} parent=1 // pred_check
      _
    $region27: #{convlstm_cell_forward.1} parent=1 // pred_check_branch
      %494 = sbr.rel (0) target = $region29
    $region28: #{convlstm_cell_forward.1} parent=1 // pred_region
      _
    $region29: #{convlstm_cell_forward.1} parent=1 // pred_fallthru
      _
    // Predicated region
    $region30: #{convlstm_cell_forward.1} parent=1 // pred_check
      _
    $region31: #{convlstm_cell_forward.1} parent=1 // pred_check_branch
      %496 = sbr.rel (0) target = $region33
    $region32: #{convlstm_cell_forward.1} parent=1 // pred_region
      %498 = dma.done [#allocation4], 512
    $region33: #{convlstm_cell_forward.1} parent=1 // pred_fallthru
      _
    %499 = vsyncpa [#allocation4], 1

</llo_original>
